<compile_context>
chip_gen: v6e
topology: v6e:2x2x1
jax: 0.10.0
libtpu: 0.0.40
codegen_flags: <defaults>
</compile_context>

<pallas_src>
import numpy as np
import jax
import jax.numpy as jnp
from jax.experimental import pallas as pl
from jax.experimental.pallas import tpu as pltpu


# ----------------------------- kernel bodies -----------------------------

def _paca_compute(x_ref, w1p_ref, b1p_ref, w2p_ref, b2p_ref,
                  w1c_ref, b1c_ref, w2c_ref, b2c_ref):
    """Shared compute. Returns (x_f32, gate_f32), both (BB, W, C)."""
    x = x_ref[...].astype(jnp.float32)                          # (BB, W, C)

    # --- PA branch: max over channels, batched 2-layer MLP over W ---
    row_max = jnp.max(x, axis=2)                                # (BB, W)
    pa_h = jnp.maximum(
        jnp.dot(row_max, w1p_ref[...],
                preferred_element_type=jnp.float32) + b1p_ref[...], 0.0)  # (BB, Hp)
    pa = jnp.dot(pa_h, w2p_ref[...],
                 preferred_element_type=jnp.float32) + b2p_ref[...]       # (BB, W)

    # --- CA branch: max over points, batched 2-layer MLP over C ---
    col_max = jnp.max(x, axis=1)                                # (BB, C)
    ca_h = jnp.maximum(
        jnp.dot(col_max, w1c_ref[...],
                preferred_element_type=jnp.float32) + b1c_ref[...], 0.0)  # (BB, Hc)
    ca = jnp.dot(ca_h, w2c_ref[...],
                 preferred_element_type=jnp.float32) + b2c_ref[...]       # (BB, C)

    # --- combine, gate (f32 sigmoid; v5e EUP has no bf16) ---
    gate = jax.nn.sigmoid(pa[:, :, None] * ca[:, None, :])      # (BB, W, C)
    return x, gate


def paca_kernel_with_weight(x_ref, w1p_ref, b1p_ref, w2p_ref, b2p_ref,
                            w1c_ref, b1c_ref, w2c_ref, b2c_ref,
                            out_ref, wgt_ref):
    x, gate = _paca_compute(x_ref, w1p_ref, b1p_ref, w2p_ref, b2p_ref,
                            w1c_ref, b1c_ref, w2c_ref, b2c_ref)
    wgt_ref[...] = gate.astype(wgt_ref.dtype)      # possibly bf16 (output bytes)
    out_ref[...] = (x * gate).astype(out_ref.dtype)  # f32 gate -> full accuracy


def paca_kernel_out_only(x_ref, w1p_ref, b1p_ref, w2p_ref, b2p_ref,
                         w1c_ref, b1c_ref, w2c_ref, b2c_ref, out_ref):
    x, gate = _paca_compute(x_ref, w1p_ref, b1p_ref, w2p_ref, b2p_ref,
                            w1c_ref, b1c_ref, w2c_ref, b2c_ref)
    out_ref[...] = (x * gate).astype(out_ref.dtype)


# --------------------------- sizing / tiling ------------------------------

def _tpu_vmem_bytes():
    """Per-TensorCore VMEM capacity; conservative 64 MiB (v7x) fallback."""
    try:
        info = pltpu.get_tpu_info()
        for attr in ("vmem_capacity_bytes", "vmem_size_bytes"):
            cap = getattr(info, attr, None)
            if cap:
                return int(cap)
    except Exception:
        pass
    return 64 << 20


def _num_tensorcores():
    """2 on v7x (dual-TC per chip), 1 on v5e/v6e."""
    try:
        d = jax.devices()[0]
        n = getattr(d, "num_cores", None)
        if n:
            return int(n)
        if "v7" in str(getattr(d, "device_kind", "")).lower():
            return 2
    except Exception:
        pass
    return 1


def _choose_block_batch(b, bytes_per_bb, block_budget, num_cores):
    """Largest batch tile fitting the VMEM budget.  On dual-TC chips cap the
    tile so each core gets >=2 grid steps (prefetch/writeback overlap); on
    single-TC chips take the biggest block (fewer per-step overheads)."""
    bb = max(1, int(block_budget // bytes_per_bb))
    bb = min(bb, b)
    if num_cores >= 2 and b >= 4 * num_cores:
        bb = min(bb, max(1, b // (2 * num_cores)))
    # Pick a divisor of b, preferring multiples of 8 (sublanes / MXU rows).
    best, best_m8 = 1, None
    for d in range(1, bb + 1):
        if b % d == 0:
            best = d
            if d % 8 == 0:
                best_m8 = d
    if best_m8 is not None and best_m8 * 2 >= best:
        return best_m8
    return best


# ------------------------------- wrapper ----------------------------------

def paca_layer(x, W1p, b1p, W2p, b2p, W1c, b1c, W2c, b2c,
               *, return_weight=True, wgt_dtype=jnp.bfloat16):
    """x: (B, W, C), f32 or bf16.  Weights in PyTorch nn.Linear convention:
       PA: W1p (Hp, W), b1p (Hp,), W2p (W, Hp), b2p (W,)
       CA: W1c (Hc, C), b1c (Hc,), W2c (C, Hc), b2c (C,)
    Returns (out, paca_normal_weight) (module semantics), or just `out` when
    return_weight=False (saves ~1/3 of HBM traffic)."""
    b, w, c = x.shape
    h_pa = W1p.shape[0]
    h_ca = W1c.shape[0]

    # Re-orient for lane-dense batched matmuls: y = act @ W.T + b.
    w1p_t, w2p_t = W1p.T, W2p.T              # (W, Hp), (Hp, W)
    w1c_t, w2c_t = W1c.T, W2c.T              # (C, Hc), (Hc, C)
    b1p_r, b2p_r = b1p[None, :], b2p[None, :]
    b1c_r, b2c_r = b1c[None, :], b2c[None, :]

    in_bytes = int(np.dtype(x.dtype).itemsize)
    out_bytes = in_bytes
    wgt_bytes = int(np.dtype(wgt_dtype).itemsize) if return_weight else 0

    # Per-batch-row footprint: double-buffered x + output block(s), plus the
    # live f32 gate intermediate and ~4 B/elem of temporary headroom.
    bytes_per_bb = w * c * (2 * in_bytes + 2 * out_bytes + 2 * wgt_bytes + 4 + 4)

    vmem_cap = _tpu_vmem_bytes()
    vmem_limit = int(min(0.75 * vmem_cap, 96 << 20))  # 48 MiB v7x, 96 MiB v5e/v6e
    weights_bytes = 8 * (w * h_pa + c * h_ca + w + c + h_pa + h_ca)  # dbl-buffered f32
    block_budget = vmem_limit - weights_bytes - (2 << 20)

    if bytes_per_bb > block_budget:
        # TODO(synk): add a W-tiling grid axis (running col-max for the CA
        # branch, recompute PA per W tile) for shapes where a single-batch
        # block exceeds VMEM.
        raise ValueError(
            f"PACA block (1, {w}, {c}) needs ~{bytes_per_bb} B of VMEM, over the "
            f"{block_budget} B budget; W-tiling is not implemented.")

    bb = _choose_block_batch(b, bytes_per_bb, block_budget, _num_tensorcores())

    def _const_spec(shape):
        nd = len(shape)
        return pl.BlockSpec(shape, lambda i, _nd=nd: (0,) * _nd)

    xwc_spec = pl.BlockSpec((bb, w, c), lambda i: (i, 0, 0))

    in_specs = [
        xwc_spec,                                        # x
        _const_spec((w, h_pa)), _const_spec((1, h_pa)),  # PA layer 1
        _const_spec((h_pa, w)), _const_spec((1, w)),     # PA layer 2
        _const_spec((c, h_ca)), _const_spec((1, h_ca)),  # CA layer 1
        _const_spec((h_ca, c)), _const_spec((1, c)),     # CA layer 2
    ]

    if return_weight:
        kernel = paca_kernel_with_weight
        out_shape = (jax.ShapeDtypeStruct((b, w, c), x.dtype),
                     jax.ShapeDtypeStruct((b, w, c), wgt_dtype))
        out_specs = [xwc_spec, xwc_spec]
    else:
        kernel = paca_kernel_out_only
        out_shape = jax.ShapeDtypeStruct((b, w, c), x.dtype)
        out_specs = xwc_spec

    grid_spec = pltpu.PrefetchScalarGridSpec(
        num_scalar_prefetch=0,
        grid=(b // bb,),
        in_specs=in_specs,
        out_specs=out_specs,
    )

    return pl.pallas_call(
        kernel,
        out_shape=out_shape,
        grid_spec=grid_spec,
        compiler_params=pltpu.CompilerParams(
            dimension_semantics=("parallel",),
            vmem_limit_bytes=vmem_limit),
    )(x, w1p_t, b1p_r, w2p_t, b2p_r, w1c_t, b1c_r, w2c_t, b2c_r)


# ------------------------------- test utils --------------------------------

def linear_init(key, out_f, in_f):
    """PyTorch nn.Linear default init: U(-1/sqrt(in), 1/sqrt(in))."""
    k1, k2 = jax.random.split(key)
    bound = 1.0 / np.sqrt(in_f)
    W = jax.random.uniform(k1, (out_f, in_f), jnp.float32, -bound, bound)
    b = jax.random.uniform(k2, (out_f,), jnp.float32, -bound, bound)
    return W, b


def ref_forward(x, W1p, b1p, W2p, b2p, W1c, b1c, W2c, b2c):
    """Pure-JAX reference mirroring the PyTorch PACALayer forward."""
    xf = x.astype(jnp.float32)
    row_max = jnp.max(xf, axis=2)                                     # (b, w)
    pa = jnp.maximum(row_max @ W1p.T + b1p, 0.0) @ W2p.T + b2p        # (b, w)
    col_max = jnp.max(xf, axis=1)                                     # (b, c)
    ca = jnp.maximum(col_max @ W1c.T + b1c, 0.0) @ W2c.T + b2c        # (b, c)
    wgt = jax.nn.sigmoid(pa[:, :, None] * ca[:, None, :])             # (b, w, c)
    return (xf * wgt).astype(x.dtype), wgt


if __name__ == "__main__":
    # PACALayer(dim_ca=C, dim_pa=W, reduction_r) applied to x of shape (B, W, C).
    B, W, C = 8, 16, 32
    reduction_r = 4
    reduction_pa = W // reduction_r          # PALayer reduction
    reduction_ca = C // reduction_r          # CALayer reduction
    H_PA = W // reduction_pa                 # hidden = reduction_r = 4
    H_CA = C // reduction_ca                 # hidden = reduction_r = 4

    key = jax.random.PRNGKey(0)
    kx, k1, k2, k3, k4 = jax.random.split(key, 5)

    x = jax.random.normal(kx, (B, W, C), jnp.float32)

    # PA MLP: Linear(W -> H_PA), Linear(H_PA -> W)
    W1p, b1p = linear_init(k1, H_PA, W)
    W2p, b2p = linear_init(k2, W, H_PA)
    # CA MLP: Linear(C -> H_CA), Linear(H_CA -> C)
    W1c, b1c = linear_init(k3, H_CA, C)
    W2c, b2c = linear_init(k4, C, H_CA)

    ref_out, ref_wgt = ref_forward(x, W1p, b1p, W2p, b2p, W1c, b1c, W2c, b2c)

    # Full module semantics: (out, paca_normal_weight).  Gate emitted as bf16.
    out, wgt = paca_layer(x, W1p, b1p, W2p, b2p, W1c, b1c, W2c, b2c)
    out = jax.block_until_ready(out)
    wgt = jax.block_until_ready(wgt)

    np.testing.assert_allclose(np.asarray(out), np.asarray(ref_out),
                               rtol=1e-5, atol=2e-5)
    np.testing.assert_allclose(np.asarray(wgt).astype(np.float32),
                               np.asarray(ref_wgt), rtol=1e-2, atol=1e-2)

    # Output-only fast path (caller does not consume the gate).
    out2 = paca_layer(x, W1p, b1p, W2p, b2p, W1c, b1c, W2c, b2c,
                      return_weight=False)
    out2 = jax.block_until_ready(out2)
    np.testing.assert_allclose(np.asarray(out2), np.asarray(ref_out),
                               rtol=1e-5, atol=2e-5)

    print("KERNEL_OK")
</pallas_src>

<mosaic_0001>
module attributes {stable_mosaic.version = 11 : i64} {
  func.func @paca_kernel_with_weight(%arg0: i32, %arg1: memref<8x16x32xf32, #tpu.memory_space<vmem>>, %arg2: memref<16x4xf32, #tpu.memory_space<vmem>>, %arg3: memref<1x4xf32, #tpu.memory_space<vmem>>, %arg4: memref<4x16xf32, #tpu.memory_space<vmem>>, %arg5: memref<1x16xf32, #tpu.memory_space<vmem>>, %arg6: memref<32x4xf32, #tpu.memory_space<vmem>>, %arg7: memref<1x4xf32, #tpu.memory_space<vmem>>, %arg8: memref<4x32xf32, #tpu.memory_space<vmem>>, %arg9: memref<1x32xf32, #tpu.memory_space<vmem>>, %arg10: memref<8x16x32xf32, #tpu.memory_space<vmem>>, %arg11: memref<8x16x32xbf16, #tpu.memory_space<vmem>>) attributes {dimension_semantics = [#tpu.dimension_semantics<parallel>], iteration_bounds = array<i64: 1>, scalar_prefetch = 0 : i64, scratch_operands = 0 : i64, tpu.core_type = #tpu.core_type<tc>, window_params = [{transform_indices = @transform_0, window_bounds = array<i64: 8, 16, 32>}, {pipeline_mode = #tpu.pipeline_mode<synchronous>, transform_indices = @transform_1, window_bounds = array<i64: 16, 4>}, {pipeline_mode = #tpu.pipeline_mode<synchronous>, transform_indices = @transform_2, window_bounds = array<i64: 1, 4>}, {pipeline_mode = #tpu.pipeline_mode<synchronous>, transform_indices = @transform_3, window_bounds = array<i64: 4, 16>}, {pipeline_mode = #tpu.pipeline_mode<synchronous>, transform_indices = @transform_4, window_bounds = array<i64: 1, 16>}, {pipeline_mode = #tpu.pipeline_mode<synchronous>, transform_indices = @transform_5, window_bounds = array<i64: 32, 4>}, {pipeline_mode = #tpu.pipeline_mode<synchronous>, transform_indices = @transform_6, window_bounds = array<i64: 1, 4>}, {pipeline_mode = #tpu.pipeline_mode<synchronous>, transform_indices = @transform_7, window_bounds = array<i64: 4, 32>}, {pipeline_mode = #tpu.pipeline_mode<synchronous>, transform_indices = @transform_8, window_bounds = array<i64: 1, 32>}, {transform_indices = @transform_9, window_bounds = array<i64: 8, 16, 32>}, {transform_indices = @transform_10, window_bounds = array<i64: 8, 16, 32>}]} {
    %c0 = arith.constant 0 : index
    %c0_0 = arith.constant 0 : index
    %c0_1 = arith.constant 0 : index
    %0 = vector.load %arg1[%c0, %c0_0, %c0_1] : memref<8x16x32xf32, #tpu.memory_space<vmem>>, vector<8x16x32xf32>
    %cst = arith.constant dense<0xFF800000> : vector<8x16xf32>
    %1 = vector.multi_reduction <maximumf>, %0, %cst [2] : vector<8x16x32xf32> to vector<8x16xf32>
    %c0_2 = arith.constant 0 : index
    %c0_3 = arith.constant 0 : index
    %2 = vector.load %arg2[%c0_2, %c0_3] : memref<16x4xf32, #tpu.memory_space<vmem>>, vector<16x4xf32>
    %cst_4 = arith.constant dense<0.000000e+00> : vector<8x4xf32>
    %3 = tpu.matmul %1, %2, %cst_4 {dimension_numbers = #tpu.dot_dimension_numbers<[1], [0], [0], [1], [0, 0, 1, 1], [], []>} : vector<8x16xf32>, vector<16x4xf32>, vector<8x4xf32> -> vector<8x4xf32>
    %c0_5 = arith.constant 0 : index
    %c0_6 = arith.constant 0 : index
    %4 = vector.load %arg3[%c0_5, %c0_6] : memref<1x4xf32, #tpu.memory_space<vmem>>, vector<1x4xf32>
    %5 = vector.broadcast %4 : vector<1x4xf32> to vector<8x4xf32>
    %6 = arith.addf %3, %5 : vector<8x4xf32>
    %cst_7 = arith.constant 0.000000e+00 : f32
    %7 = vector.broadcast %cst_7 : f32 to vector<8x4xf32>
    %8 = arith.maximumf %6, %7 : vector<8x4xf32>
    %c0_8 = arith.constant 0 : index
    %c0_9 = arith.constant 0 : index
    %9 = vector.load %arg4[%c0_8, %c0_9] : memref<4x16xf32, #tpu.memory_space<vmem>>, vector<4x16xf32>
    %cst_10 = arith.constant dense<0.000000e+00> : vector<8x16xf32>
    %10 = tpu.matmul %8, %9, %cst_10 {dimension_numbers = #tpu.dot_dimension_numbers<[1], [0], [0], [1], [0, 0, 1, 1], [], []>} : vector<8x4xf32>, vector<4x16xf32>, vector<8x16xf32> -> vector<8x16xf32>
    %c0_11 = arith.constant 0 : index
    %c0_12 = arith.constant 0 : index
    %11 = vector.load %arg5[%c0_11, %c0_12] : memref<1x16xf32, #tpu.memory_space<vmem>>, vector<1x16xf32>
    %12 = vector.broadcast %11 : vector<1x16xf32> to vector<8x16xf32>
    %13 = arith.addf %10, %12 : vector<8x16xf32>
    %cst_13 = arith.constant dense<0xFF800000> : vector<8x32xf32>
    %14 = vector.multi_reduction <maximumf>, %0, %cst_13 [1] : vector<8x16x32xf32> to vector<8x32xf32>
    %c0_14 = arith.constant 0 : index
    %c0_15 = arith.constant 0 : index
    %15 = vector.load %arg6[%c0_14, %c0_15] : memref<32x4xf32, #tpu.memory_space<vmem>>, vector<32x4xf32>
    %cst_16 = arith.constant dense<0.000000e+00> : vector<8x4xf32>
    %16 = tpu.matmul %14, %15, %cst_16 {dimension_numbers = #tpu.dot_dimension_numbers<[1], [0], [0], [1], [0, 0, 1, 1], [], []>} : vector<8x32xf32>, vector<32x4xf32>, vector<8x4xf32> -> vector<8x4xf32>
    %c0_17 = arith.constant 0 : index
    %c0_18 = arith.constant 0 : index
    %17 = vector.load %arg7[%c0_17, %c0_18] : memref<1x4xf32, #tpu.memory_space<vmem>>, vector<1x4xf32>
    %18 = vector.broadcast %17 : vector<1x4xf32> to vector<8x4xf32>
    %19 = arith.addf %16, %18 : vector<8x4xf32>
    %cst_19 = arith.constant 0.000000e+00 : f32
    %20 = vector.broadcast %cst_19 : f32 to vector<8x4xf32>
    %21 = arith.maximumf %19, %20 : vector<8x4xf32>
    %c0_20 = arith.constant 0 : index
    %c0_21 = arith.constant 0 : index
    %22 = vector.load %arg8[%c0_20, %c0_21] : memref<4x32xf32, #tpu.memory_space<vmem>>, vector<4x32xf32>
    %cst_22 = arith.constant dense<0.000000e+00> : vector<8x32xf32>
    %23 = tpu.matmul %21, %22, %cst_22 {dimension_numbers = #tpu.dot_dimension_numbers<[1], [0], [0], [1], [0, 0, 1, 1], [], []>} : vector<8x4xf32>, vector<4x32xf32>, vector<8x32xf32> -> vector<8x32xf32>
    %c0_23 = arith.constant 0 : index
    %c0_24 = arith.constant 0 : index
    %24 = vector.load %arg9[%c0_23, %c0_24] : memref<1x32xf32, #tpu.memory_space<vmem>>, vector<1x32xf32>
    %25 = vector.broadcast %24 : vector<1x32xf32> to vector<8x32xf32>
    %26 = arith.addf %23, %25 : vector<8x32xf32>
    %27 = vector.shape_cast %13 : vector<8x16xf32> to vector<8x16x1xf32>
    %28 = vector.shape_cast %26 : vector<8x32xf32> to vector<8x1x32xf32>
    %29 = vector.broadcast %27 : vector<8x16x1xf32> to vector<8x16x32xf32>
    %30 = vector.broadcast %28 : vector<8x1x32xf32> to vector<8x16x32xf32>
    %31 = arith.mulf %29, %30 : vector<8x16x32xf32>
    %32 = arith.negf %31 : vector<8x16x32xf32>
    %33 = math.exp %32 : vector<8x16x32xf32>
    %cst_25 = arith.constant 1.000000e+00 : f32
    %34 = vector.broadcast %cst_25 : f32 to vector<8x16x32xf32>
    %35 = arith.addf %34, %33 : vector<8x16x32xf32>
    %36 = arith.divf %34, %35 : vector<8x16x32xf32>
    %37 = arith.truncf %36 : vector<8x16x32xf32> to vector<8x16x32xbf16>
    %c0_26 = arith.constant 0 : index
    %c0_27 = arith.constant 0 : index
    %c0_28 = arith.constant 0 : index
    %38 = vector.load %arg11[%c0_26, %c0_27, %c0_28] : memref<8x16x32xbf16, #tpu.memory_space<vmem>>, vector<8x16x32xbf16>
    tpu.vector_store %arg11[%c0_26, %c0_27, %c0_28], %37 {strides = array<i32>} : memref<8x16x32xbf16, #tpu.memory_space<vmem>>, vector<8x16x32xbf16>,
    %39 = arith.mulf %0, %36 : vector<8x16x32xf32>
    %c0_29 = arith.constant 0 : index
    %c0_30 = arith.constant 0 : index
    %c0_31 = arith.constant 0 : index
    %40 = vector.load %arg10[%c0_29, %c0_30, %c0_31] : memref<8x16x32xf32, #tpu.memory_space<vmem>>, vector<8x16x32xf32>
    tpu.vector_store %arg10[%c0_29, %c0_30, %c0_31], %39 {strides = array<i32>} : memref<8x16x32xf32, #tpu.memory_space<vmem>>, vector<8x16x32xf32>,
    return
  }
  func.func @transform_0(%arg0: i32) -> (i32, i32, i32) {
    %c0_i32 = arith.constant 0 : i32
    %c0_i32_0 = arith.constant 0 : i32
    %c0_i32_1 = arith.constant 0 : i32
    return %arg0, %c0_i32, %c0_i32_0 : i32, i32, i32
  }
  func.func @transform_1(%arg0: i32) -> (i32, i32) {
    %c0_i32 = arith.constant 0 : i32
    %c0_i32_0 = arith.constant 0 : i32
    %c0_i32_1 = arith.constant 0 : i32
    return %c0_i32, %c0_i32_0 : i32, i32
  }
  func.func @transform_2(%arg0: i32) -> (i32, i32) {
    %c0_i32 = arith.constant 0 : i32
    %c0_i32_0 = arith.constant 0 : i32
    %c0_i32_1 = arith.constant 0 : i32
    return %c0_i32, %c0_i32_0 : i32, i32
  }
  func.func @transform_3(%arg0: i32) -> (i32, i32) {
    %c0_i32 = arith.constant 0 : i32
    %c0_i32_0 = arith.constant 0 : i32
    %c0_i32_1 = arith.constant 0 : i32
    return %c0_i32, %c0_i32_0 : i32, i32
  }
  func.func @transform_4(%arg0: i32) -> (i32, i32) {
    %c0_i32 = arith.constant 0 : i32
    %c0_i32_0 = arith.constant 0 : i32
    %c0_i32_1 = arith.constant 0 : i32
    return %c0_i32, %c0_i32_0 : i32, i32
  }
  func.func @transform_5(%arg0: i32) -> (i32, i32) {
    %c0_i32 = arith.constant 0 : i32
    %c0_i32_0 = arith.constant 0 : i32
    %c0_i32_1 = arith.constant 0 : i32
    return %c0_i32, %c0_i32_0 : i32, i32
  }
  func.func @transform_6(%arg0: i32) -> (i32, i32) {
    %c0_i32 = arith.constant 0 : i32
    %c0_i32_0 = arith.constant 0 : i32
    %c0_i32_1 = arith.constant 0 : i32
    return %c0_i32, %c0_i32_0 : i32, i32
  }
  func.func @transform_7(%arg0: i32) -> (i32, i32) {
    %c0_i32 = arith.constant 0 : i32
    %c0_i32_0 = arith.constant 0 : i32
    %c0_i32_1 = arith.constant 0 : i32
    return %c0_i32, %c0_i32_0 : i32, i32
  }
  func.func @transform_8(%arg0: i32) -> (i32, i32) {
    %c0_i32 = arith.constant 0 : i32
    %c0_i32_0 = arith.constant 0 : i32
    %c0_i32_1 = arith.constant 0 : i32
    return %c0_i32, %c0_i32_0 : i32, i32
  }
  func.func @transform_9(%arg0: i32) -> (i32, i32, i32) {
    %c0_i32 = arith.constant 0 : i32
    %c0_i32_0 = arith.constant 0 : i32
    %c0_i32_1 = arith.constant 0 : i32
    return %arg0, %c0_i32, %c0_i32_0 : i32, i32, i32
  }
  func.func @transform_10(%arg0: i32) -> (i32, i32, i32) {
    %c0_i32 = arith.constant 0 : i32
    %c0_i32_0 = arith.constant 0 : i32
    %c0_i32_1 = arith.constant 0 : i32
    return %arg0, %c0_i32, %c0_i32_0 : i32, i32, i32
  }
}

</mosaic_0001>

<llo_original>
// kernel: tpu_custom_call.1
$region0: #{tpu_custom_call.1}
  #allocation0 [shape = 'u32[]', space=smem, size = 0x4, offset = 0x4, fixed_abs, tag = 'smem constant byte address 0x4 - core index']
  #allocation1 [shape = 'u32[144,128]{1,0:T(1,128)}', space=vmem, size = 0x12000, scoped, tag = 'internal scratch']
  %s0 = inlined_call_operand.hbm [shape: f32[8,16,32], index: 0, kind: input, shape index: {}]
  %s1 = inlined_call_operand.vmem [shape: f32[16,4], index: 1, kind: input, shape index: {}]
  %s2 = inlined_call_operand.vmem [shape: f32[1,4], index: 2, kind: input, shape index: {}]
  %s3 = inlined_call_operand.vmem [shape: f32[4,16], index: 3, kind: input, shape index: {}]
  %s4 = inlined_call_operand.vmem [shape: f32[1,16], index: 4, kind: input, shape index: {}]
  %s5 = inlined_call_operand.vmem [shape: f32[32,4], index: 5, kind: input, shape index: {}]
  %s6 = inlined_call_operand.vmem [shape: f32[1,4], index: 6, kind: input, shape index: {}]
  %s7 = inlined_call_operand.vmem [shape: f32[4,32], index: 7, kind: input, shape index: {}]
  %s8 = inlined_call_operand.vmem [shape: f32[1,32], index: 8, kind: input, shape index: {}]
  %s9 = inlined_call_operand.hbm [shape: f32[8,16,32], index: 9, kind: output, shape index: {0}]
  %s10 = inlined_call_operand.hbm [shape: bf16[8,16,32], index: 10, kind: output, shape index: {1}]
  %11 = xla_tuple %s9, %s10
  %s12 = sld [smem:[#allocation0]]
  $region58: #{tpu_custom_call.1} parent=0
    _
  %s14 = ssub.s32 1, %s12
  %s15 = scalar_select 0, %s14, %s12
  $region1: #{tpu_custom_call.1} parent=0
    #allocation2 [shape = 'u8[65536]{0}', space=vmem, size = 0x10000, scoped, tag = 'input window, operand 0, single buffered']
    #allocation3 [shape = 's32[1]{0}', space=sflag, size = 0x4, scoped, tag = 'scoped memory for tpu_custom_call.1']
    #allocation4 [shape = 's32[1]{0}', space=sflag, size = 0x4, scoped, tag = 'scoped memory for tpu_custom_call.1']
    #allocation5 [shape = 'u8[65536]{0}', space=vmem, size = 0x10000, scoped, tag = 'output window, operand 0, single buffered']
    #allocation6 [shape = 'u8[32768]{0}', space=vmem, size = 0x8000, scoped, tag = 'output window, operand 1, single buffered']
    #allocation7 [shape = 's32[1]{0}', space=sflag, size = 0x4, scoped, tag = 'scoped memory for tpu_custom_call.1']
    %16 = vsyncpa [#allocation3], 0
    %17 = vsyncpa [#allocation4], 0
    %18 = vsyncpa [#allocation7], 0
    // Predicated region
    $region2: #{tpu_custom_call.1} parent=1 // pred_check
      _
    $region3: #{tpu_custom_call.1} parent=1 // pred_check_branch
      %20 = sbr.rel (0) target = $region5
    $region4: #{tpu_custom_call.1} parent=1 // pred_region
      %s22 = ssub.s32 2048, 2048
      %23 = vsyncadd [#allocation3], %s22
      %s24 = sshll.u32 [#allocation2], 4
      %s25 = int_to_ptr.vmem [resolvable:$true] %s24
      %30 = dma.hbm_to_vmem [thread:$0]  %s0, 2048, %s25, [#allocation3], 128, 128, 8
    $region5: #{tpu_custom_call.1} parent=1 // pred_fallthru
      _
    // Predicated region
    $region6: #{tpu_custom_call.1} parent=1 // pred_check
      _
    $region7: #{tpu_custom_call.1} parent=1 // pred_check_branch
      %32 = sbr.rel (0) target = $region9
    $region8: #{tpu_custom_call.1} parent=1 // pred_region
      _
    $region9: #{tpu_custom_call.1} parent=1 // pred_fallthru
      _
    // Predicated region
    $region10: #{tpu_custom_call.1} parent=1 // pred_check
      _
    $region11: #{tpu_custom_call.1} parent=1 // pred_check_branch
      %34 = sbr.rel (0) target = $region13
    $region12: #{tpu_custom_call.1} parent=1 // pred_region
      _
    $region13: #{tpu_custom_call.1} parent=1 // pred_fallthru
      _
    // Predicated region
    $region14: #{tpu_custom_call.1} parent=1 // pred_check
      _
    $region15: #{tpu_custom_call.1} parent=1 // pred_check_branch
      %36 = sbr.rel (0) target = $region17
    $region16: #{tpu_custom_call.1} parent=1 // pred_region
      _
    $region17: #{tpu_custom_call.1} parent=1 // pred_fallthru
      _
    // Predicated region
    $region18: #{tpu_custom_call.1} parent=1 // pred_check
      _
    $region19: #{tpu_custom_call.1} parent=1 // pred_check_branch
      %38 = sbr.rel (0) target = $region21
    $region20: #{tpu_custom_call.1} parent=1 // pred_region
      _
    $region21: #{tpu_custom_call.1} parent=1 // pred_fallthru
      _
    // Predicated region
    $region22: #{tpu_custom_call.1} parent=1 // pred_check
      _
    $region23: #{tpu_custom_call.1} parent=1 // pred_check_branch
      %40 = sbr.rel (0) target = $region25
    $region24: #{tpu_custom_call.1} parent=1 // pred_region
      _
    $region25: #{tpu_custom_call.1} parent=1 // pred_fallthru
      _
    // Predicated region
    $region26: #{tpu_custom_call.1} parent=1 // pred_check
      _
    $region27: #{tpu_custom_call.1} parent=1 // pred_check_branch
      %42 = sbr.rel (0) target = $region29
    $region28: #{tpu_custom_call.1} parent=1 // pred_region
      _
    $region29: #{tpu_custom_call.1} parent=1 // pred_fallthru
      _
    // Predicated region
    $region30: #{tpu_custom_call.1} parent=1 // pred_check
      _
    $region31: #{tpu_custom_call.1} parent=1 // pred_check_branch
      %44 = sbr.rel (0) target = $region33
    $region32: #{tpu_custom_call.1} parent=1 // pred_region
      _
    $region33: #{tpu_custom_call.1} parent=1 // pred_fallthru
      _
    // Predicated region
    $region34: #{tpu_custom_call.1} parent=1 // pred_check
      _
    $region35: #{tpu_custom_call.1} parent=1 // pred_check_branch
      %46 = sbr.rel (0) target = $region37
    $region36: #{tpu_custom_call.1} parent=1 // pred_region
      _
    $region37: #{tpu_custom_call.1} parent=1 // pred_fallthru
      _
    // Predicated region
    $region38: #{tpu_custom_call.1} parent=1 // pred_check
      _
    $region39: #{tpu_custom_call.1} parent=1 // pred_check_branch
      %48 = sbr.rel (0) target = $region41
    $region40: #{tpu_custom_call.1} parent=1 // pred_region
      %49 = dma.done [#allocation3], 2048
    $region41: #{tpu_custom_call.1} parent=1 // pred_fallthru
      _
    %v50 = vld [vmem:[#allocation2] sm:$0xff]
    %v51 = vld [vmem:[#allocation2 + $0x8] sm:$0xff]
    %v52 = vld [vmem:[#allocation2 + $0x10] sm:$0xff]
    %v53 = vld [vmem:[#allocation2 + $0x18] sm:$0xff]
    %v54 = vld [vmem:[#allocation2 + $0x20] sm:$0xff]
    %v55 = vld [vmem:[#allocation2 + $0x28] sm:$0xff]
    %v56 = vld [vmem:[#allocation2 + $0x30] sm:$0xff]
    %v57 = vld [vmem:[#allocation2 + $0x38] sm:$0xff]
    %v58 = vld [vmem:[#allocation2 + $0x40] sm:$0xff]
    %v59 = vld [vmem:[#allocation2 + $0x48] sm:$0xff]
    %v60 = vld [vmem:[#allocation2 + $0x50] sm:$0xff]
    %v61 = vld [vmem:[#allocation2 + $0x58] sm:$0xff]
    %v62 = vld [vmem:[#allocation2 + $0x60] sm:$0xff]
    %v63 = vld [vmem:[#allocation2 + $0x68] sm:$0xff]
    %v64 = vld [vmem:[#allocation2 + $0x70] sm:$0xff]
    %v65 = vld [vmem:[#allocation2 + $0x78] sm:$0xff]
    %vm66 = vcmask 261120
    %v67 = vsel %vm66, %v50, -inf
    %68 = vmax.xlane.f32.xlu0 %v67
    %v69 = vpop.xlane.xlu0 %68
    %v70 = vsel %vm66, %v51, -inf
    %71 = vmax.xlane.f32.xlu0 %v70
    %v72 = vpop.xlane.xlu0 %71
    %v73 = vsel %vm66, %v52, -inf
    %74 = vmax.xlane.f32.xlu0 %v73
    %v75 = vpop.xlane.xlu0 %74
    %v76 = vsel %vm66, %v53, -inf
    %77 = vmax.xlane.f32.xlu0 %v76
    %v78 = vpop.xlane.xlu0 %77
    %v79 = vsel %vm66, %v54, -inf
    %80 = vmax.xlane.f32.xlu0 %v79
    %v81 = vpop.xlane.xlu0 %80
    %v82 = vsel %vm66, %v55, -inf
    %83 = vmax.xlane.f32.xlu0 %v82
    %v84 = vpop.xlane.xlu0 %83
    %v85 = vsel %vm66, %v56, -inf
    %86 = vmax.xlane.f32.xlu0 %v85
    %v87 = vpop.xlane.xlu0 %86
    %v88 = vsel %vm66, %v57, -inf
    %89 = vmax.xlane.f32.xlu0 %v88
    %v90 = vpop.xlane.xlu0 %89
    %v91 = vsel %vm66, %v58, -inf
    %92 = vmax.xlane.f32.xlu0 %v91
    %v93 = vpop.xlane.xlu0 %92
    %v94 = vsel %vm66, %v59, -inf
    %95 = vmax.xlane.f32.xlu0 %v94
    %v96 = vpop.xlane.xlu0 %95
    %v97 = vsel %vm66, %v60, -inf
    %98 = vmax.xlane.f32.xlu0 %v97
    %v99 = vpop.xlane.xlu0 %98
    %v100 = vsel %vm66, %v61, -inf
    %101 = vmax.xlane.f32.xlu0 %v100
    %v102 = vpop.xlane.xlu0 %101
    %v103 = vsel %vm66, %v62, -inf
    %104 = vmax.xlane.f32.xlu0 %v103
    %v105 = vpop.xlane.xlu0 %104
    %v106 = vsel %vm66, %v63, -inf
    %107 = vmax.xlane.f32.xlu0 %v106
    %v108 = vpop.xlane.xlu0 %107
    %v109 = vsel %vm66, %v64, -inf
    %110 = vmax.xlane.f32.xlu0 %v109
    %v111 = vpop.xlane.xlu0 %110
    %v112 = vsel %vm66, %v65, -inf
    %113 = vmax.xlane.f32.xlu0 %v112
    %v114 = vpop.xlane.xlu0 %113
    %v115 = vld [vmem:[%s1] sm:$0xff]
    %v116 = vld [vmem:[%s1 + $0x8] sm:$0xff]
    %v117 = vld [vmem:[%s2] sm:$0x1]
    %v119 = vlaneseq
    %v120 = vshrl.u32 %v119, 7
    %v121 = vsub.s32 0, %v120
    %v122 = vrot.slane %v117, %v121
    %v140 = vlaneseq
    %v141 = vand.u32 %v140, 127
    %v142 = vlaneseq
    %v143 = vshrl.u32 %v142, 7
    %v144 = vsub.s32 %v141, %v143
    %v145 = vrot.slane %v69, %v144
    %v146 = vadd.s32 %v141, 4294967288
    %v147 = vlaneseq
    %v148 = vshrl.u32 %v147, 7
    %v149 = vsub.s32 %v146, %v148
    %v150 = vrot.slane %v72, %v149
    %vm151 = vcmask 130112
    %v152 = vsel %vm151, %v150, %v145
    %v153 = vlaneseq
    %v154 = vshrl.u32 %v153, 7
    %v155 = vsub.s32 %v141, %v154
    %v156 = vrot.slane %v75, %v155
    %v157 = vlaneseq
    %v158 = vshrl.u32 %v157, 7
    %v159 = vsub.s32 %v146, %v158
    %v160 = vrot.slane %v78, %v159
    %v161 = vsel %vm151, %v160, %v156
    %v162 = vlaneseq
    %v163 = vshrl.u32 %v162, 7
    %v164 = vsub.s32 %v141, %v163
    %v165 = vrot.slane %v81, %v164
    %v166 = vlaneseq
    %v167 = vshrl.u32 %v166, 7
    %v168 = vsub.s32 %v146, %v167
    %v169 = vrot.slane %v84, %v168
    %v170 = vsel %vm151, %v169, %v165
    %v171 = vlaneseq
    %v172 = vshrl.u32 %v171, 7
    %v173 = vsub.s32 %v141, %v172
    %v174 = vrot.slane %v87, %v173
    %v175 = vlaneseq
    %v176 = vshrl.u32 %v175, 7
    %v177 = vsub.s32 %v146, %v176
    %v178 = vrot.slane %v90, %v177
    %v179 = vsel %vm151, %v178, %v174
    %v180 = vlaneseq
    %v181 = vshrl.u32 %v180, 7
    %v182 = vsub.s32 %v141, %v181
    %v183 = vrot.slane %v93, %v182
    %v184 = vlaneseq
    %v185 = vshrl.u32 %v184, 7
    %v186 = vsub.s32 %v146, %v185
    %v187 = vrot.slane %v96, %v186
    %v188 = vsel %vm151, %v187, %v183
    %v189 = vlaneseq
    %v190 = vshrl.u32 %v189, 7
    %v191 = vsub.s32 %v141, %v190
    %v192 = vrot.slane %v99, %v191
    %v193 = vlaneseq
    %v194 = vshrl.u32 %v193, 7
    %v195 = vsub.s32 %v146, %v194
    %v196 = vrot.slane %v102, %v195
    %v197 = vsel %vm151, %v196, %v192
    %v198 = vlaneseq
    %v199 = vshrl.u32 %v198, 7
    %v200 = vsub.s32 %v141, %v199
    %v201 = vrot.slane %v105, %v200
    %v202 = vlaneseq
    %v203 = vshrl.u32 %v202, 7
    %v204 = vsub.s32 %v146, %v203
    %v205 = vrot.slane %v108, %v204
    %v206 = vsel %vm151, %v205, %v201
    %v207 = vlaneseq
    %v208 = vshrl.u32 %v207, 7
    %v209 = vsub.s32 %v141, %v208
    %v210 = vrot.slane %v111, %v209
    %v211 = vlaneseq
    %v212 = vshrl.u32 %v211, 7
    %v213 = vsub.s32 %v146, %v212
    %v214 = vrot.slane %v114, %v213
    %v215 = vsel %vm151, %v214, %v210
    %vm216 = vcmask 1041409
    %v217 = vsel %vm216, %v161, %v152
    %vm218 = vcmask 1042434
    %v219 = vsel %vm218, %v170, %v217
    %vm220 = vcmask 1043459
    %v221 = vsel %vm220, %v179, %v219
    %vm222 = vcmask 1044484
    %v223 = vsel %vm222, %v188, %v221
    %vm224 = vcmask 1045509
    %v225 = vsel %vm224, %v197, %v223
    %vm226 = vcmask 1046534
    %v227 = vsel %vm226, %v206, %v225
    %vm228 = vcmask 1047559
    %v229 = vsel %vm228, %v215, %v227
    %vm230 = vcmask 130048
    %v231 = vsel %vm230, %v229, 0
    %233 = vmatprep.subr.mxu0 0.0
    %234 = vmatpush1.msra.mxu0 0.0
    %235 = vmatprep.subr.mxu0 0.0
    %236 = vmatpush1.msra.mxu0 0.0
    %237 = vmatprep.subr.mxu0 0.0
    %238 = vmatpush1.msra.mxu0 0.0
    %239 = vmatprep.subr.mxu0 0.0
    %240 = vmatpush1.msra.mxu0 0.0
    %241 = vmatprep.subr.mxu0 0.0
    %242 = vmatpush1.msra.mxu0 0.0
    %243 = vmatprep.subr.mxu0 0.0
    %244 = vmatpush1.msra.mxu0 0.0
    %245 = vmatprep.subr.mxu0 0.0
    %246 = vmatpush1.msra.mxu0 0.0
    %247 = vmatprep.subr.mxu0 0.0
    %248 = vmatpush1.msra.mxu0 0.0
    %249 = vmatprep.subr.mxu0 0.0
    %250 = vmatpush1.msra.mxu0 0.0
    %251 = vmatprep.subr.mxu0 0.0
    %252 = vmatpush1.msra.mxu0 0.0
    %253 = vmatprep.subr.mxu0 0.0
    %254 = vmatpush1.msra.mxu0 0.0
    %255 = vmatprep.subr.mxu0 0.0
    %256 = vmatpush1.msra.mxu0 0.0
    %257 = vmatprep.subr.mxu0 0.0
    %258 = vmatpush1.msra.mxu0 0.0
    %259 = vmatprep.subr.mxu0 0.0
    %260 = vmatpush1.msra.mxu0 0.0
    %261 = vmatprep.subr.mxu0 0.0
    %262 = vmatpush1.msra.mxu0 %v116
    %263 = vmatprep.subr.mxu0 0.0
    %264 = vmatpush1.msra.mxu0 %v115
    %265 = vmatprep.subr.mxu0 0.0
    %266 = vmatpush2.msra.mxu0 0.0
    %267 = vmatprep.subr.mxu0 0.0
    %268 = vmatpush2.msra.mxu0 0.0
    %269 = vmatprep.subr.mxu0 0.0
    %270 = vmatpush2.msra.mxu0 0.0
    %271 = vmatprep.subr.mxu0 0.0
    %272 = vmatpush2.msra.mxu0 0.0
    %273 = vmatprep.subr.mxu0 0.0
    %274 = vmatpush2.msra.mxu0 0.0
    %275 = vmatprep.subr.mxu0 0.0
    %276 = vmatpush2.msra.mxu0 0.0
    %277 = vmatprep.subr.mxu0 0.0
    %278 = vmatpush2.msra.mxu0 0.0
    %279 = vmatprep.subr.mxu0 0.0
    %280 = vmatpush2.msra.mxu0 0.0
    %281 = vmatprep.subr.mxu0 0.0
    %282 = vmatpush2.msra.mxu0 0.0
    %283 = vmatprep.subr.mxu0 0.0
    %284 = vmatpush2.msra.mxu0 0.0
    %285 = vmatprep.subr.mxu0 0.0
    %286 = vmatpush2.msra.mxu0 0.0
    %287 = vmatprep.subr.mxu0 0.0
    %288 = vmatpush2.msra.mxu0 0.0
    %289 = vmatprep.subr.mxu0 0.0
    %290 = vmatpush2.msra.mxu0 0.0
    %291 = vmatprep.subr.mxu0 0.0
    %292 = vmatpush2.msra.mxu0 0.0
    %293 = vmatprep.subr.mxu0 0.0
    %294 = vmatpush2.msra.mxu0 0.0
    %295 = vmatprep.subr.mxu0 0.0
    %296 = vmatpush2.msra.mxu0 0.0
    %297 = vmatprep.mubr.f32.mxu0 0.0
    %298 = vmatmul.mubr.f32.gmra.mxu0 %v231
    %v299 = vpop.f32.mrf.mxu0
    %v300 = vadd.f32 %v122, %v299
    %v301 = vpop.f32.mrf.mxu0
    %302 = vdwg.mxu0
    %v303 = vmax.f32 %v300, 0.0
    %v304 = vld [vmem:[%s3] sm:$0xf]
    %v305 = vld [vmem:[%s4] sm:$0x1]
    %v307 = vlaneseq
    %v308 = vshrl.u32 %v307, 7
    %v309 = vsub.s32 0, %v308
    %v310 = vrot.slane %v305, %v309
    %vm312 = vcmask 31744
    %v314 = vsel %vm312, %v303, 0
    %vm316 = vcmask 1043456
    %v318 = vsel %vm316, %v304, 0
    %320 = vmatprep.subr.mxu0 0.0
    %321 = vmatpush1.msra.mxu0 0.0
    %322 = vmatprep.subr.mxu0 0.0
    %323 = vmatpush1.msra.mxu0 0.0
    %324 = vmatprep.subr.mxu0 0.0
    %325 = vmatpush1.msra.mxu0 0.0
    %326 = vmatprep.subr.mxu0 0.0
    %327 = vmatpush1.msra.mxu0 0.0
    %328 = vmatprep.subr.mxu0 0.0
    %329 = vmatpush1.msra.mxu0 0.0
    %330 = vmatprep.subr.mxu0 0.0
    %331 = vmatpush1.msra.mxu0 0.0
    %332 = vmatprep.subr.mxu0 0.0
    %333 = vmatpush1.msra.mxu0 0.0
    %334 = vmatprep.subr.mxu0 0.0
    %335 = vmatpush1.msra.mxu0 0.0
    %336 = vmatprep.subr.mxu0 0.0
    %337 = vmatpush1.msra.mxu0 0.0
    %338 = vmatprep.subr.mxu0 0.0
    %339 = vmatpush1.msra.mxu0 0.0
    %340 = vmatprep.subr.mxu0 0.0
    %341 = vmatpush1.msra.mxu0 0.0
    %342 = vmatprep.subr.mxu0 0.0
    %343 = vmatpush1.msra.mxu0 0.0
    %344 = vmatprep.subr.mxu0 0.0
    %345 = vmatpush1.msra.mxu0 0.0
    %346 = vmatprep.subr.mxu0 0.0
    %347 = vmatpush1.msra.mxu0 0.0
    %348 = vmatprep.subr.mxu0 0.0
    %349 = vmatpush1.msra.mxu0 0.0
    %350 = vmatprep.subr.mxu0 0.0
    %351 = vmatpush1.msra.mxu0 %v318
    %352 = vmatprep.subr.mxu0 0.0
    %353 = vmatpush2.msra.mxu0 0.0
    %354 = vmatprep.subr.mxu0 0.0
    %355 = vmatpush2.msra.mxu0 0.0
    %356 = vmatprep.subr.mxu0 0.0
    %357 = vmatpush2.msra.mxu0 0.0
    %358 = vmatprep.subr.mxu0 0.0
    %359 = vmatpush2.msra.mxu0 0.0
    %360 = vmatprep.subr.mxu0 0.0
    %361 = vmatpush2.msra.mxu0 0.0
    %362 = vmatprep.subr.mxu0 0.0
    %363 = vmatpush2.msra.mxu0 0.0
    %364 = vmatprep.subr.mxu0 0.0
    %365 = vmatpush2.msra.mxu0 0.0
    %366 = vmatprep.subr.mxu0 0.0
    %367 = vmatpush2.msra.mxu0 0.0
    %368 = vmatprep.subr.mxu0 0.0
    %369 = vmatpush2.msra.mxu0 0.0
    %370 = vmatprep.subr.mxu0 0.0
    %371 = vmatpush2.msra.mxu0 0.0
    %372 = vmatprep.subr.mxu0 0.0
    %373 = vmatpush2.msra.mxu0 0.0
    %374 = vmatprep.subr.mxu0 0.0
    %375 = vmatpush2.msra.mxu0 0.0
    %376 = vmatprep.subr.mxu0 0.0
    %377 = vmatpush2.msra.mxu0 0.0
    %378 = vmatprep.subr.mxu0 0.0
    %379 = vmatpush2.msra.mxu0 0.0
    %380 = vmatprep.subr.mxu0 0.0
    %381 = vmatpush2.msra.mxu0 0.0
    %382 = vmatprep.subr.mxu0 0.0
    %383 = vmatpush2.msra.mxu0 0.0
    %384 = vmatprep.mubr.f32.mxu0 0.0
    %385 = vmatmul.mubr.f32.gmra.mxu0 %v314
    %v386 = vpop.f32.mrf.mxu0
    %v387 = vadd.f32 %v310, %v386
    %v388 = vpop.f32.mrf.mxu0
    %389 = vdwg.mxu0
    %v390 = vmax.f32 %v67, %v70
    %v391 = vrot.slane %v390, 4
    %v392 = vmax.f32 %v390, %v391
    %v393 = vrot.slane %v392, 2
    %v394 = vmax.f32 %v392, %v393
    %v395 = vrot.slane %v394, 1
    %v396 = vmax.f32 %v394, %v395
    %v397 = vmax.f32 %v73, %v76
    %v398 = vrot.slane %v397, 4
    %v399 = vmax.f32 %v397, %v398
    %v400 = vrot.slane %v399, 2
    %v401 = vmax.f32 %v399, %v400
    %v402 = vrot.slane %v401, 1
    %v403 = vmax.f32 %v401, %v402
    %v404 = vmax.f32 %v79, %v82
    %v405 = vrot.slane %v404, 4
    %v406 = vmax.f32 %v404, %v405
    %v407 = vrot.slane %v406, 2
    %v408 = vmax.f32 %v406, %v407
    %v409 = vrot.slane %v408, 1
    %v410 = vmax.f32 %v408, %v409
    %v411 = vmax.f32 %v85, %v88
    %v412 = vrot.slane %v411, 4
    %v413 = vmax.f32 %v411, %v412
    %v414 = vrot.slane %v413, 2
    %v415 = vmax.f32 %v413, %v414
    %v416 = vrot.slane %v415, 1
    %v417 = vmax.f32 %v415, %v416
    %v418 = vmax.f32 %v91, %v94
    %v419 = vrot.slane %v418, 4
    %v420 = vmax.f32 %v418, %v419
    %v421 = vrot.slane %v420, 2
    %v422 = vmax.f32 %v420, %v421
    %v423 = vrot.slane %v422, 1
    %v424 = vmax.f32 %v422, %v423
    %v425 = vmax.f32 %v97, %v100
    %v426 = vrot.slane %v425, 4
    %v427 = vmax.f32 %v425, %v426
    %v428 = vrot.slane %v427, 2
    %v429 = vmax.f32 %v427, %v428
    %v430 = vrot.slane %v429, 1
    %v431 = vmax.f32 %v429, %v430
    %v432 = vmax.f32 %v103, %v106
    %v433 = vrot.slane %v432, 4
    %v434 = vmax.f32 %v432, %v433
    %v435 = vrot.slane %v434, 2
    %v436 = vmax.f32 %v434, %v435
    %v437 = vrot.slane %v436, 1
    %v438 = vmax.f32 %v436, %v437
    %v439 = vmax.f32 %v109, %v112
    %v440 = vrot.slane %v439, 4
    %v441 = vmax.f32 %v439, %v440
    %v442 = vrot.slane %v441, 2
    %v443 = vmax.f32 %v441, %v442
    %v444 = vrot.slane %v443, 1
    %v445 = vmax.f32 %v443, %v444
    %v446 = vld [vmem:[%s5] sm:$0xff]
    %v447 = vld [vmem:[%s5 + $0x8] sm:$0xff]
    %v448 = vld [vmem:[%s5 + $0x10] sm:$0xff]
    %v449 = vld [vmem:[%s5 + $0x18] sm:$0xff]
    %v450 = vld [vmem:[%s6] sm:$0x1]
    %v452 = vlaneseq
    %v453 = vshrl.u32 %v452, 7
    %v454 = vsub.s32 0, %v453
    %v455 = vrot.slane %v450, %v454
    %v465 = vsel %vm216, %v403, %v396
    %v466 = vsel %vm218, %v410, %v465
    %v467 = vsel %vm220, %v417, %v466
    %v468 = vsel %vm222, %v424, %v467
    %v469 = vsel %vm224, %v431, %v468
    %v470 = vsel %vm226, %v438, %v469
    %v471 = vsel %vm228, %v445, %v470
    %v472 = vsel %vm66, %v471, 0
    %474 = vmatprep.subr.mxu0 0.0
    %475 = vmatpush1.msra.mxu0 0.0
    %476 = vmatprep.subr.mxu0 0.0
    %477 = vmatpush1.msra.mxu0 0.0
    %478 = vmatprep.subr.mxu0 0.0
    %479 = vmatpush1.msra.mxu0 0.0
    %480 = vmatprep.subr.mxu0 0.0
    %481 = vmatpush1.msra.mxu0 0.0
    %482 = vmatprep.subr.mxu0 0.0
    %483 = vmatpush1.msra.mxu0 0.0
    %484 = vmatprep.subr.mxu0 0.0
    %485 = vmatpush1.msra.mxu0 0.0
    %486 = vmatprep.subr.mxu0 0.0
    %487 = vmatpush1.msra.mxu0 0.0
    %488 = vmatprep.subr.mxu0 0.0
    %489 = vmatpush1.msra.mxu0 0.0
    %490 = vmatprep.subr.mxu0 0.0
    %491 = vmatpush1.msra.mxu0 0.0
    %492 = vmatprep.subr.mxu0 0.0
    %493 = vmatpush1.msra.mxu0 0.0
    %494 = vmatprep.subr.mxu0 0.0
    %495 = vmatpush1.msra.mxu0 0.0
    %496 = vmatprep.subr.mxu0 0.0
    %497 = vmatpush1.msra.mxu0 0.0
    %498 = vmatprep.subr.mxu0 0.0
    %499 = vmatpush1.msra.mxu0 %v449
    %500 = vmatprep.subr.mxu0 0.0
    %501 = vmatpush1.msra.mxu0 %v448
    %502 = vmatprep.subr.mxu0 0.0
    %503 = vmatpush1.msra.mxu0 %v447
    %504 = vmatprep.subr.mxu0 0.0
    %505 = vmatpush1.msra.mxu0 %v446
    %506 = vmatprep.subr.mxu0 0.0
    %507 = vmatpush2.msra.mxu0 0.0
    %508 = vmatprep.subr.mxu0 0.0
    %509 = vmatpush2.msra.mxu0 0.0
    %510 = vmatprep.subr.mxu0 0.0
    %511 = vmatpush2.msra.mxu0 0.0
    %512 = vmatprep.subr.mxu0 0.0
    %513 = vmatpush2.msra.mxu0 0.0
    %514 = vmatprep.subr.mxu0 0.0
    %515 = vmatpush2.msra.mxu0 0.0
    %516 = vmatprep.subr.mxu0 0.0
    %517 = vmatpush2.msra.mxu0 0.0
    %518 = vmatprep.subr.mxu0 0.0
    %519 = vmatpush2.msra.mxu0 0.0
    %520 = vmatprep.subr.mxu0 0.0
    %521 = vmatpush2.msra.mxu0 0.0
    %522 = vmatprep.subr.mxu0 0.0
    %523 = vmatpush2.msra.mxu0 0.0
    %524 = vmatprep.subr.mxu0 0.0
    %525 = vmatpush2.msra.mxu0 0.0
    %526 = vmatprep.subr.mxu0 0.0
    %527 = vmatpush2.msra.mxu0 0.0
    %528 = vmatprep.subr.mxu0 0.0
    %529 = vmatpush2.msra.mxu0 0.0
    %530 = vmatprep.subr.mxu0 0.0
    %531 = vmatpush2.msra.mxu0 0.0
    %532 = vmatprep.subr.mxu0 0.0
    %533 = vmatpush2.msra.mxu0 0.0
    %534 = vmatprep.subr.mxu0 0.0
    %535 = vmatpush2.msra.mxu0 0.0
    %536 = vmatprep.subr.mxu0 0.0
    %537 = vmatpush2.msra.mxu0 0.0
    %538 = vmatprep.mubr.f32.mxu0 0.0
    %539 = vmatmul.mubr.f32.gmra.mxu0 %v472
    %v540 = vpop.f32.mrf.mxu0
    %v541 = vadd.f32 %v455, %v540
    %v542 = vpop.f32.mrf.mxu0
    %543 = vdwg.mxu0
    %v544 = vmax.f32 %v541, 0.0
    %v545 = vld [vmem:[%s7] sm:$0xf]
    %v546 = vld [vmem:[%s8] sm:$0x1]
    %v548 = vlaneseq
    %v549 = vshrl.u32 %v548, 7
    %v550 = vsub.s32 0, %v549
    %v551 = vrot.slane %v546, %v550
    %v554 = vsel %vm312, %v544, 0
    %v557 = vsel %vm316, %v545, 0
    %559 = vmatprep.subr.mxu0 0.0
    %560 = vmatpush1.msra.mxu0 0.0
    %561 = vmatprep.subr.mxu0 0.0
    %562 = vmatpush1.msra.mxu0 0.0
    %563 = vmatprep.subr.mxu0 0.0
    %564 = vmatpush1.msra.mxu0 0.0
    %565 = vmatprep.subr.mxu0 0.0
    %566 = vmatpush1.msra.mxu0 0.0
    %567 = vmatprep.subr.mxu0 0.0
    %568 = vmatpush1.msra.mxu0 0.0
    %569 = vmatprep.subr.mxu0 0.0
    %570 = vmatpush1.msra.mxu0 0.0
    %571 = vmatprep.subr.mxu0 0.0
    %572 = vmatpush1.msra.mxu0 0.0
    %573 = vmatprep.subr.mxu0 0.0
    %574 = vmatpush1.msra.mxu0 0.0
    %575 = vmatprep.subr.mxu0 0.0
    %576 = vmatpush1.msra.mxu0 0.0
    %577 = vmatprep.subr.mxu0 0.0
    %578 = vmatpush1.msra.mxu0 0.0
    %579 = vmatprep.subr.mxu0 0.0
    %580 = vmatpush1.msra.mxu0 0.0
    %581 = vmatprep.subr.mxu0 0.0
    %582 = vmatpush1.msra.mxu0 0.0
    %583 = vmatprep.subr.mxu0 0.0
    %584 = vmatpush1.msra.mxu0 0.0
    %585 = vmatprep.subr.mxu0 0.0
    %586 = vmatpush1.msra.mxu0 0.0
    %587 = vmatprep.subr.mxu0 0.0
    %588 = vmatpush1.msra.mxu0 0.0
    %589 = vmatprep.subr.mxu0 0.0
    %590 = vmatpush1.msra.mxu0 %v557
    %591 = vmatprep.subr.mxu0 0.0
    %592 = vmatpush2.msra.mxu0 0.0
    %593 = vmatprep.subr.mxu0 0.0
    %594 = vmatpush2.msra.mxu0 0.0
    %595 = vmatprep.subr.mxu0 0.0
    %596 = vmatpush2.msra.mxu0 0.0
    %597 = vmatprep.subr.mxu0 0.0
    %598 = vmatpush2.msra.mxu0 0.0
    %599 = vmatprep.subr.mxu0 0.0
    %600 = vmatpush2.msra.mxu0 0.0
    %601 = vmatprep.subr.mxu0 0.0
    %602 = vmatpush2.msra.mxu0 0.0
    %603 = vmatprep.subr.mxu0 0.0
    %604 = vmatpush2.msra.mxu0 0.0
    %605 = vmatprep.subr.mxu0 0.0
    %606 = vmatpush2.msra.mxu0 0.0
    %607 = vmatprep.subr.mxu0 0.0
    %608 = vmatpush2.msra.mxu0 0.0
    %609 = vmatprep.subr.mxu0 0.0
    %610 = vmatpush2.msra.mxu0 0.0
    %611 = vmatprep.subr.mxu0 0.0
    %612 = vmatpush2.msra.mxu0 0.0
    %613 = vmatprep.subr.mxu0 0.0
    %614 = vmatpush2.msra.mxu0 0.0
    %615 = vmatprep.subr.mxu0 0.0
    %616 = vmatpush2.msra.mxu0 0.0
    %617 = vmatprep.subr.mxu0 0.0
    %618 = vmatpush2.msra.mxu0 0.0
    %619 = vmatprep.subr.mxu0 0.0
    %620 = vmatpush2.msra.mxu0 0.0
    %621 = vmatprep.subr.mxu0 0.0
    %622 = vmatpush2.msra.mxu0 0.0
    %623 = vmatprep.mubr.f32.mxu0 0.0
    %624 = vmatmul.mubr.f32.gmra.mxu0 %v554
    %v625 = vpop.f32.mrf.mxu0
    %v626 = vadd.f32 %v551, %v625
    %v627 = vpop.f32.mrf.mxu0
    %628 = vdwg.mxu0
    %v629 = vlaneseq
    %v630 = vshrl.u32 %v629, 7
    %v631 = vsub.s32 0, %v630
    %v632 = vrot.slane %v387, %v631
    %634 = vbcast.lane.b32.xlu0 %v632, 256
    %v635 = vpop.permute.xlu0 %634
    %s637 = sor.u32 256, 8
    %638 = vbcast.lane.b32.xlu0 %v632, %s637
    %v639 = vpop.permute.xlu0 %638
    %v640 = vlaneseq
    %v641 = vshrl.u32 %v640, 7
    %v642 = vsub.s32 1, %v641
    %v643 = vrot.slane %v387, %v642
    %645 = vbcast.lane.b32.xlu0 %v643, 256
    %v646 = vpop.permute.xlu0 %645
    %s648 = sor.u32 256, 8
    %649 = vbcast.lane.b32.xlu0 %v643, %s648
    %v650 = vpop.permute.xlu0 %649
    %v651 = vlaneseq
    %v652 = vshrl.u32 %v651, 7
    %v653 = vsub.s32 2, %v652
    %v654 = vrot.slane %v387, %v653
    %656 = vbcast.lane.b32.xlu0 %v654, 256
    %v657 = vpop.permute.xlu0 %656
    %s659 = sor.u32 256, 8
    %660 = vbcast.lane.b32.xlu0 %v654, %s659
    %v661 = vpop.permute.xlu0 %660
    %v662 = vlaneseq
    %v663 = vshrl.u32 %v662, 7
    %v664 = vsub.s32 3, %v663
    %v665 = vrot.slane %v387, %v664
    %667 = vbcast.lane.b32.xlu0 %v665, 256
    %v668 = vpop.permute.xlu0 %667
    %s670 = sor.u32 256, 8
    %671 = vbcast.lane.b32.xlu0 %v665, %s670
    %v672 = vpop.permute.xlu0 %671
    %v673 = vlaneseq
    %v674 = vshrl.u32 %v673, 7
    %v675 = vsub.s32 4, %v674
    %v676 = vrot.slane %v387, %v675
    %678 = vbcast.lane.b32.xlu0 %v676, 256
    %v679 = vpop.permute.xlu0 %678
    %s681 = sor.u32 256, 8
    %682 = vbcast.lane.b32.xlu0 %v676, %s681
    %v683 = vpop.permute.xlu0 %682
    %v684 = vlaneseq
    %v685 = vshrl.u32 %v684, 7
    %v686 = vsub.s32 5, %v685
    %v687 = vrot.slane %v387, %v686
    %689 = vbcast.lane.b32.xlu0 %v687, 256
    %v690 = vpop.permute.xlu0 %689
    %s692 = sor.u32 256, 8
    %693 = vbcast.lane.b32.xlu0 %v687, %s692
    %v694 = vpop.permute.xlu0 %693
    %v695 = vlaneseq
    %v696 = vshrl.u32 %v695, 7
    %v697 = vsub.s32 6, %v696
    %v698 = vrot.slane %v387, %v697
    %700 = vbcast.lane.b32.xlu0 %v698, 256
    %v701 = vpop.permute.xlu0 %700
    %s703 = sor.u32 256, 8
    %704 = vbcast.lane.b32.xlu0 %v698, %s703
    %v705 = vpop.permute.xlu0 %704
    %v706 = vlaneseq
    %v707 = vshrl.u32 %v706, 7
    %v708 = vsub.s32 7, %v707
    %v709 = vrot.slane %v387, %v708
    %711 = vbcast.lane.b32.xlu0 %v709, 256
    %v712 = vpop.permute.xlu0 %711
    %s714 = sor.u32 256, 8
    %715 = vbcast.lane.b32.xlu0 %v709, %s714
    %v716 = vpop.permute.xlu0 %715
    %v718 = vcombine.high %v626, %v626
    %v720 = vunpack.c.l.s4 1966171168
    %v721 = vunpack.c.0.s8 %v720
    %v722 = vlaneseq
    %v723 = vshrl.u32 %v722, 7
    %v724 = vsub.s32 %v721, %v723
    %v725 = vrot.slane %v626, %v724
    %v727 = vunpack.c.l.s4 1966171168
    %v728 = vunpack.c.0.s8 %v727
    %v729 = vlaneseq
    %v730 = vshrl.u32 %v729, 7
    %v731 = vsub.s32 %v728, %v730
    %v732 = vrot.slane %v718, %v731
    %v733 = vcombine.high %v725, %v725
    %v734 = vcombine.high %v732, %v732
    %v736 = vunpack.c.l.s4 1966171168
    %v737 = vunpack.c.0.s8 %v736
    %v738 = vlaneseq
    %v739 = vshrl.u32 %v738, 7
    %v740 = vsub.s32 %v737, %v739
    %v741 = vrot.slane %v725, %v740
    %v743 = vunpack.c.l.s4 1966171168
    %v744 = vunpack.c.0.s8 %v743
    %v745 = vlaneseq
    %v746 = vshrl.u32 %v745, 7
    %v747 = vsub.s32 %v744, %v746
    %v748 = vrot.slane %v732, %v747
    %v750 = vunpack.c.l.s4 1966171168
    %v751 = vunpack.c.0.s8 %v750
    %v752 = vlaneseq
    %v753 = vshrl.u32 %v752, 7
    %v754 = vsub.s32 %v751, %v753
    %v755 = vrot.slane %v733, %v754
    %v757 = vunpack.c.l.s4 1966171168
    %v758 = vunpack.c.0.s8 %v757
    %v759 = vlaneseq
    %v760 = vshrl.u32 %v759, 7
    %v761 = vsub.s32 %v758, %v760
    %v762 = vrot.slane %v734, %v761
    %v763 = vcombine.high %v741, %v741
    %v764 = vcombine.high %v748, %v748
    %v765 = vcombine.high %v755, %v755
    %v766 = vcombine.high %v762, %v762
    %v767 = vlaneseq
    %v768 = vshrl.u32 %v767, 7
    %v769 = vsub.s32 0, %v768
    %v770 = vrot.slane %v741, %v769
    %v771 = vlaneseq
    %v772 = vshrl.u32 %v771, 7
    %v773 = vsub.s32 0, %v772
    %v774 = vrot.slane %v755, %v773
    %v775 = vlaneseq
    %v776 = vshrl.u32 %v775, 7
    %v777 = vsub.s32 0, %v776
    %v778 = vrot.slane %v763, %v777
    %v779 = vlaneseq
    %v780 = vshrl.u32 %v779, 7
    %v781 = vsub.s32 0, %v780
    %v782 = vrot.slane %v765, %v781
    %v783 = vlaneseq
    %v784 = vshrl.u32 %v783, 7
    %v785 = vsub.s32 0, %v784
    %v786 = vrot.slane %v748, %v785
    %v787 = vlaneseq
    %v788 = vshrl.u32 %v787, 7
    %v789 = vsub.s32 0, %v788
    %v790 = vrot.slane %v762, %v789
    %v791 = vlaneseq
    %v792 = vshrl.u32 %v791, 7
    %v793 = vsub.s32 0, %v792
    %v794 = vrot.slane %v764, %v793
    %v795 = vlaneseq
    %v796 = vshrl.u32 %v795, 7
    %v797 = vsub.s32 0, %v796
    %v798 = vrot.slane %v766, %v797
    %v807 = vmul.f32 %v635, %v770
    %v808 = vmul.f32 %v639, %v770
    %v809 = vmul.f32 %v646, %v774
    %v810 = vmul.f32 %v650, %v774
    %v811 = vmul.f32 %v657, %v778
    %v812 = vmul.f32 %v661, %v778
    %v813 = vmul.f32 %v668, %v782
    %v814 = vmul.f32 %v672, %v782
    %v815 = vmul.f32 %v679, %v786
    %v816 = vmul.f32 %v683, %v786
    %v817 = vmul.f32 %v690, %v790
    %v818 = vmul.f32 %v694, %v790
    %v819 = vmul.f32 %v701, %v794
    %v820 = vmul.f32 %v705, %v794
    %v821 = vmul.f32 %v712, %v798
    %v822 = vmul.f32 %v716, %v798
    %v823 = vxor.u32 %v807, 2147483648
    %v824 = vxor.u32 %v808, 2147483648
    %v825 = vxor.u32 %v809, 2147483648
    %v826 = vxor.u32 %v810, 2147483648
    %v827 = vxor.u32 %v811, 2147483648
    %v828 = vxor.u32 %v812, 2147483648
    %v829 = vxor.u32 %v813, 2147483648
    %v830 = vxor.u32 %v814, 2147483648
    %v831 = vxor.u32 %v815, 2147483648
    %v832 = vxor.u32 %v816, 2147483648
    %v833 = vxor.u32 %v817, 2147483648
    %v834 = vxor.u32 %v818, 2147483648
    %v835 = vxor.u32 %v819, 2147483648
    %v836 = vxor.u32 %v820, 2147483648
    %v837 = vxor.u32 %v821, 2147483648
    %v838 = vxor.u32 %v822, 2147483648
    %v839 = vmul.f32 %v823, 1.442695
    %v840 = vpow.pop %v839
    %v841 = vmul.f32 %v824, 1.442695
    %v842 = vpow.pop %v841
    %v843 = vmul.f32 %v825, 1.442695
    %v844 = vpow.pop %v843
    %v845 = vmul.f32 %v826, 1.442695
    %v846 = vpow.pop %v845
    %v847 = vmul.f32 %v827, 1.442695
    %v848 = vpow.pop %v847
    %v849 = vmul.f32 %v828, 1.442695
    %v850 = vpow.pop %v849
    %v851 = vmul.f32 %v829, 1.442695
    %v852 = vpow.pop %v851
    %v853 = vmul.f32 %v830, 1.442695
    %v854 = vpow.pop %v853
    %v855 = vmul.f32 %v831, 1.442695
    %v856 = vpow.pop %v855
    %v857 = vmul.f32 %v832, 1.442695
    %v858 = vpow.pop %v857
    %v859 = vmul.f32 %v833, 1.442695
    %v860 = vpow.pop %v859
    %v861 = vmul.f32 %v834, 1.442695
    %v862 = vpow.pop %v861
    %v863 = vmul.f32 %v835, 1.442695
    %v864 = vpow.pop %v863
    %v865 = vmul.f32 %v836, 1.442695
    %v866 = vpow.pop %v865
    %v867 = vmul.f32 %v837, 1.442695
    %v868 = vpow.pop %v867
    %v869 = vmul.f32 %v838, 1.442695
    %v870 = vpow.pop %v869
    %v871 = vadd.f32 %v840, 1.0
    %v872 = vadd.f32 %v842, 1.0
    %v873 = vadd.f32 %v844, 1.0
    %v874 = vadd.f32 %v846, 1.0
    %v875 = vadd.f32 %v848, 1.0
    %v876 = vadd.f32 %v850, 1.0
    %v877 = vadd.f32 %v852, 1.0
    %v878 = vadd.f32 %v854, 1.0
    %v879 = vadd.f32 %v856, 1.0
    %v880 = vadd.f32 %v858, 1.0
    %v881 = vadd.f32 %v860, 1.0
    %v882 = vadd.f32 %v862, 1.0
    %v883 = vadd.f32 %v864, 1.0
    %v884 = vadd.f32 %v866, 1.0
    %v885 = vadd.f32 %v868, 1.0
    %v886 = vadd.f32 %v870, 1.0
    %v887 = vrcp.pop %v871
    %v888 = vmul.f32 1.0, %v887
    %v889 = vrcp.pop %v872
    %v890 = vmul.f32 1.0, %v889
    %v891 = vrcp.pop %v873
    %v892 = vmul.f32 1.0, %v891
    %v893 = vrcp.pop %v874
    %v894 = vmul.f32 1.0, %v893
    %v895 = vrcp.pop %v875
    %v896 = vmul.f32 1.0, %v895
    %v897 = vrcp.pop %v876
    %v898 = vmul.f32 1.0, %v897
    %v899 = vrcp.pop %v877
    %v900 = vmul.f32 1.0, %v899
    %v901 = vrcp.pop %v878
    %v902 = vmul.f32 1.0, %v901
    %v903 = vrcp.pop %v879
    %v904 = vmul.f32 1.0, %v903
    %v905 = vrcp.pop %v880
    %v906 = vmul.f32 1.0, %v905
    %v907 = vrcp.pop %v881
    %v908 = vmul.f32 1.0, %v907
    %v909 = vrcp.pop %v882
    %v910 = vmul.f32 1.0, %v909
    %v911 = vrcp.pop %v883
    %v912 = vmul.f32 1.0, %v911
    %v913 = vrcp.pop %v884
    %v914 = vmul.f32 1.0, %v913
    %v915 = vrcp.pop %v885
    %v916 = vmul.f32 1.0, %v915
    %v917 = vrcp.pop %v886
    %v918 = vmul.f32 1.0, %v917
    %v919 = vpack.c.bf16 %v890, %v888
    %v920 = vpack.c.bf16 %v894, %v892
    %v921 = vpack.c.bf16 %v898, %v896
    %v922 = vpack.c.bf16 %v902, %v900
    %v923 = vpack.c.bf16 %v906, %v904
    %v924 = vpack.c.bf16 %v910, %v908
    %v925 = vpack.c.bf16 %v914, %v912
    %v926 = vpack.c.bf16 %v918, %v916
    %v935 = vunpack.c.l.b16 %v919
    %v936 = vunpack.c.h.b16 %v919
    %v937 = vunpack.c.l.b16 %v920
    %v938 = vunpack.c.h.b16 %v920
    %v939 = vunpack.c.l.b16 %v921
    %v940 = vunpack.c.h.b16 %v921
    %v941 = vunpack.c.l.b16 %v922
    %v942 = vunpack.c.h.b16 %v922
    %v943 = vunpack.c.l.b16 %v923
    %v944 = vunpack.c.h.b16 %v923
    %v945 = vunpack.c.l.b16 %v924
    %v946 = vunpack.c.h.b16 %v924
    %v947 = vunpack.c.l.b16 %v925
    %v948 = vunpack.c.h.b16 %v925
    %v949 = vunpack.c.l.b16 %v926
    %v950 = vunpack.c.h.b16 %v926
    %v951 = vpack.c.b16 %v935, %v935
    %v952 = vpack.c.b16 %v936, %v936
    %v953 = vpack.c.b16 %v937, %v937
    %v954 = vpack.c.b16 %v938, %v938
    %v955 = vpack.c.b16 %v939, %v939
    %v956 = vpack.c.b16 %v940, %v940
    %v957 = vpack.c.b16 %v941, %v941
    %v958 = vpack.c.b16 %v942, %v942
    %v959 = vpack.c.b16 %v943, %v943
    %v960 = vpack.c.b16 %v944, %v944
    %v961 = vpack.c.b16 %v945, %v945
    %v962 = vpack.c.b16 %v946, %v946
    %v963 = vpack.c.b16 %v947, %v947
    %v964 = vpack.c.b16 %v948, %v948
    %v965 = vpack.c.b16 %v949, %v949
    %v966 = vpack.c.b16 %v950, %v950
    %vm983 = vcmask 257024
    %984 = vst.msk [vmem:[#allocation6] sm:$0xf] %vm983, %v951
    %985 = vst.msk [vmem:[#allocation6 + $0x4] sm:$0xf] %vm983, %v952
    %986 = vst.msk [vmem:[#allocation6 + $0x8] sm:$0xf] %vm983, %v953
    %987 = vst.msk [vmem:[#allocation6 + $0xc] sm:$0xf] %vm983, %v954
    %988 = vst.msk [vmem:[#allocation6 + $0x10] sm:$0xf] %vm983, %v955
    %989 = vst.msk [vmem:[#allocation6 + $0x14] sm:$0xf] %vm983, %v956
    %990 = vst.msk [vmem:[#allocation6 + $0x18] sm:$0xf] %vm983, %v957
    %991 = vst.msk [vmem:[#allocation6 + $0x1c] sm:$0xf] %vm983, %v958
    %992 = vst.msk [vmem:[#allocation6 + $0x20] sm:$0xf] %vm983, %v959
    %993 = vst.msk [vmem:[#allocation6 + $0x24] sm:$0xf] %vm983, %v960
    %994 = vst.msk [vmem:[#allocation6 + $0x28] sm:$0xf] %vm983, %v961
    %995 = vst.msk [vmem:[#allocation6 + $0x2c] sm:$0xf] %vm983, %v962
    %996 = vst.msk [vmem:[#allocation6 + $0x30] sm:$0xf] %vm983, %v963
    %997 = vst.msk [vmem:[#allocation6 + $0x34] sm:$0xf] %vm983, %v964
    %998 = vst.msk [vmem:[#allocation6 + $0x38] sm:$0xf] %vm983, %v965
    %999 = vst.msk [vmem:[#allocation6 + $0x3c] sm:$0xf] %vm983, %v966
    %v1000 = vmul.f32 %v50, %v888
    %v1001 = vmul.f32 %v51, %v890
    %v1002 = vmul.f32 %v52, %v892
    %v1003 = vmul.f32 %v53, %v894
    %v1004 = vmul.f32 %v54, %v896
    %v1005 = vmul.f32 %v55, %v898
    %v1006 = vmul.f32 %v56, %v900
    %v1007 = vmul.f32 %v57, %v902
    %v1008 = vmul.f32 %v58, %v904
    %v1009 = vmul.f32 %v59, %v906
    %v1010 = vmul.f32 %v60, %v908
    %v1011 = vmul.f32 %v61, %v910
    %v1012 = vmul.f32 %v62, %v912
    %v1013 = vmul.f32 %v63, %v914
    %v1014 = vmul.f32 %v64, %v916
    %v1015 = vmul.f32 %v65, %v918
    %1016 = vst.msk [vmem:[#allocation5] sm:$0xff] %vm66, %v1000
    %1017 = vst.msk [vmem:[#allocation5 + $0x8] sm:$0xff] %vm66, %v1001
    %1018 = vst.msk [vmem:[#allocation5 + $0x10] sm:$0xff] %vm66, %v1002
    %1019 = vst.msk [vmem:[#allocation5 + $0x18] sm:$0xff] %vm66, %v1003
    %1020 = vst.msk [vmem:[#allocation5 + $0x20] sm:$0xff] %vm66, %v1004
    %1021 = vst.msk [vmem:[#allocation5 + $0x28] sm:$0xff] %vm66, %v1005
    %1022 = vst.msk [vmem:[#allocation5 + $0x30] sm:$0xff] %vm66, %v1006
    %1023 = vst.msk [vmem:[#allocation5 + $0x38] sm:$0xff] %vm66, %v1007
    %1024 = vst.msk [vmem:[#allocation5 + $0x40] sm:$0xff] %vm66, %v1008
    %1025 = vst.msk [vmem:[#allocation5 + $0x48] sm:$0xff] %vm66, %v1009
    %1026 = vst.msk [vmem:[#allocation5 + $0x50] sm:$0xff] %vm66, %v1010
    %1027 = vst.msk [vmem:[#allocation5 + $0x58] sm:$0xff] %vm66, %v1011
    %1028 = vst.msk [vmem:[#allocation5 + $0x60] sm:$0xff] %vm66, %v1012
    %1029 = vst.msk [vmem:[#allocation5 + $0x68] sm:$0xff] %vm66, %v1013
    %1030 = vst.msk [vmem:[#allocation5 + $0x70] sm:$0xff] %vm66, %v1014
    %1031 = vst.msk [vmem:[#allocation5 + $0x78] sm:$0xff] %vm66, %v1015
    // Predicated region
    $region42: #{tpu_custom_call.1} parent=1 // pred_check
      _
    $region43: #{tpu_custom_call.1} parent=1 // pred_check_branch
      %1033 = sbr.rel (0) target = $region45
    $region44: #{tpu_custom_call.1} parent=1 // pred_region
      %s1035 = ssub.s32 2048, 2048
      %1036 = vsyncadd [#allocation4], %s1035
      %s1037 = sshll.u32 [#allocation5], 4
      %s1038 = int_to_ptr.vmem [resolvable:$true] %s1037
      %1043 = dma.vmem_to_hbm [thread:$0]  %s1038, 2048, %s9, [#allocation4], 128, 128, 8
    $region45: #{tpu_custom_call.1} parent=1 // pred_fallthru
      _
    // Predicated region
    $region46: #{tpu_custom_call.1} parent=1 // pred_check
      _
    $region47: #{tpu_custom_call.1} parent=1 // pred_check_branch
      %1045 = sbr.rel (0) target = $region49
    $region48: #{tpu_custom_call.1} parent=1 // pred_region
      %s1047 = ssub.s32 1024, 1024
      %1048 = vsyncadd [#allocation7], %s1047
      %s1049 = sshll.u32 [#allocation6], 4
      %s1050 = int_to_ptr.vmem [resolvable:$true] %s1049
      %1055 = dma.vmem_to_hbm [thread:$0]  %s1050, 1024, %s10, [#allocation7], 64, 64, 4
    $region49: #{tpu_custom_call.1} parent=1 // pred_fallthru
      _
    // Predicated region
    $region50: #{tpu_custom_call.1} parent=1 // pred_check
      _
    $region51: #{tpu_custom_call.1} parent=1 // pred_check_branch
      %1057 = sbr.rel (0) target = $region53
    $region52: #{tpu_custom_call.1} parent=1 // pred_region
      %1058 = dma.done [#allocation4], 2048
    $region53: #{tpu_custom_call.1} parent=1 // pred_fallthru
      _
    // Predicated region
    $region54: #{tpu_custom_call.1} parent=1 // pred_check
      _
    $region55: #{tpu_custom_call.1} parent=1 // pred_check_branch
      %1060 = sbr.rel (0) target = $region57
    $region56: #{tpu_custom_call.1} parent=1 // pred_region
      %1061 = dma.done [#allocation7], 1024
    $region57: #{tpu_custom_call.1} parent=1 // pred_fallthru
      _
    %1062 = vsyncpa [#allocation3], 1
    %1063 = vsyncpa [#allocation4], 1
    %1064 = vsyncpa [#allocation7], 1

</llo_original>
